<compile_context>
chip_gen: v7x
topology: tpu7x:2x2x1
jax: 0.10.0
libtpu: 0.0.40
codegen_flags: <defaults>
</compile_context>

<pallas_src>
import functools
import math

import jax
import jax.numpy as jnp
from jax import lax
from jax.experimental import pallas as pl
from jax.experimental.pallas import tpu as pltpu

C1 = 0.01 ** 2
C2 = 0.03 ** 2


def _l1ssim_kernel(pred_ref, target_ref, out_ref, *, H, W, Wp):
    # (B, H, Wp) block of lane-packed planes; cast to f32 once in VMEM.
    p = pred_ref[...].astype(jnp.float32)
    t = target_ref[...].astype(jnp.float32)

    # Hoisted edge masks (built once per grid step, reused by all 4 pools).
    # Column masks use (col % W) so the horizontal pool respects per-plane
    # boundaries inside the packed lane axis (and the global lane wrap).
    col = lax.broadcasted_iota(jnp.int32, (1, H, Wp), 2) % W
    row = lax.broadcasted_iota(jnp.int32, (1, H, Wp), 1)
    m_col_lo = (col >= 1).astype(jnp.float32)       # kills wrapped left neighbor at col 0
    m_col_hi = (col <= W - 2).astype(jnp.float32)   # kills wrapped right neighbor at col W-1
    m_row_lo = (row >= 1).astype(jnp.float32)       # kills wrapped row above at row 0
    m_row_hi = (row <= H - 2).astype(jnp.float32)   # kills wrapped row below at row H-1

    def pool3x3(x):
        # Separable 3x3 average pool, stride 1, zero padding, divisor always 9
        # (count_include_pad=True). roll(x, s)[..., j] == x[..., j - s] (wrap);
        # wrapped / cross-plane entries zeroed by the precomputed masks.
        xw = (x
              + pltpu.roll(x, 1, axis=2) * m_col_lo
              + pltpu.roll(x, Wp - 1, axis=2) * m_col_hi)
        xs = (xw
              + pltpu.roll(xw, 1, axis=1) * m_row_lo
              + pltpu.roll(xw, H - 1, axis=1) * m_row_hi)
        return xs * (1.0 / 9.0)

    mp = pool3x3(p)
    mt = pool3x3(t)
    sp = pool3x3(p - mp)
    st = pool3x3(t - mt)

    num = (2.0 * mp * mt + C1) * (2.0 * sp * st + C2)
    den = (mp * mp + mt * mt + C1) * (sp * sp + st * st + C2)
    # EUP approx reciprocal (free slot) + one Newton step: ~1e-7 rel error,
    # replaces the exact-divide sequence on the saturating VALU path.
    r = pl.reciprocal(den, approx=True)
    r = r * (2.0 - den * r)
    ssim_map = num * r

    # Reduce across the plane axis first (pure VPU adds), then one XLU reduce.
    ssim_sum = jnp.sum(jnp.sum(ssim_map, axis=0))
    l1_sum = jnp.sum(jnp.sum(jnp.abs(p - t), axis=0))

    # Lane-dense per-block partial row: lane 0 = ssim sum, lane 1 = l1 sum.
    lane = lax.broadcasted_iota(jnp.int32, (1, 128), 1)
    tile = jnp.where(lane == 0, ssim_sum,
                     jnp.where(lane == 1, l1_sum, jnp.float32(0.0)))
    out_ref[0] = tile


def _pick_block_planes(num_planes, plane_bytes, budget_bytes):
    """Largest divisor of num_planes within the f32 block budget; keep >=2 grid
    steps when there are >=2 planes (megacore sharding on v7x, pipelining)."""
    cap = max(1, min(num_planes, budget_bytes // max(plane_bytes, 1)))
    if num_planes >= 2:
        cap = max(1, min(cap, num_planes // 2))
    for d in range(cap, 0, -1):
        if num_planes % d == 0:
            return d
    return 1


def l1_ssim_loss(pred, target, w1=1.0, w2=1.0):
    """pred, target: (N, C, H, W) arrays. Returns scalar loss (f32)."""
    N, C, H, W = pred.shape
    NC = N * C
    p = pred.reshape(NC, H, W)
    t = target.reshape(NC, H, W)

    # ---- lane packing: pack kp planes along the lane axis (full vreg rows) ----
    if W >= 128:
        kp = 1
    else:
        kp = 128 // math.gcd(W, 128)       # smallest kp with kp*W % 128 == 0
        if kp * W > 512:                    # awkward W: skip packing rather than blow up width
            kp = 1
    NC_pad = ((NC + kp - 1) // kp) * kp
    pad_planes = NC_pad - NC
    if pad_planes:
        zpad = jnp.zeros((pad_planes, H, W), p.dtype)
        p = jnp.concatenate([p, zpad], axis=0)
        t = jnp.concatenate([t, jnp.zeros((pad_planes, H, W), t.dtype)], axis=0)
    GP = NC_pad // kp
    Wp = kp * W
    if kp > 1:
        p = p.reshape(GP, kp, H, W).transpose(0, 2, 1, 3).reshape(GP, H, Wp)
        t = t.reshape(GP, kp, H, W).transpose(0, 2, 1, 3).reshape(GP, H, Wp)

    # ---- generation-aware VMEM budget ----
    try:
        vmem_cap = int(pltpu.get_tpu_info().vmem_capacity_bytes)
    except Exception:
        vmem_cap = 64 * 1024 * 1024        # conservative (v7x per-TC)
    vmem_limit = min((vmem_cap * 3) // 4, 112 * 1024 * 1024)   # ~48 MiB v7x, ~96 MiB v5e/v6e
    block_budget = vmem_limit // 20        # ~12-14 live f32 intermediates + 2x2 input buffers

    # TODO(synk): planes so large that a single (H, Wp) f32 plane exceeds the
    # budget would need an H-split with halo rows; not implemented here.
    plane_bytes = H * Wp * 4
    B = _pick_block_planes(GP, plane_bytes, block_budget)
    G = GP // B

    kernel = functools.partial(_l1ssim_kernel, H=H, W=W, Wp=Wp)

    partials = pl.pallas_call(
        kernel,
        out_shape=jax.ShapeDtypeStruct((G, 1, 128), jnp.float32),
        grid_spec=pltpu.PrefetchScalarGridSpec(
            num_scalar_prefetch=0,
            grid=(G,),
            in_specs=[
                pl.BlockSpec((B, H, Wp), lambda i: (i, 0, 0)),
                pl.BlockSpec((B, H, Wp), lambda i: (i, 0, 0)),
            ],
            out_specs=pl.BlockSpec((1, 1, 128), lambda i: (i, 0, 0)),
        ),
        compiler_params=pltpu.CompilerParams(
            dimension_semantics=("parallel",),     # blocks are independent
            vmem_limit_bytes=int(vmem_limit),
        ),
    )(p, t)

    sums = jnp.sum(partials, axis=(0, 1))          # (128,), only lanes 0/1 nonzero
    # Zero-padded planes contribute exactly ssim=1 per element and 0 to L1.
    ssim_sum = sums[0] - float(pad_planes * H * W)
    l1_sum = sums[1]
    inv_total = 1.0 / float(NC * H * W)
    ssim_loss = -(ssim_sum * inv_total)
    l1_loss = l1_sum * inv_total
    return w1 * ssim_loss + w2 * l1_loss


# ---------------- pure-JAX reference (for correctness check) ----------------
def _avg_pool3x3_ref(x):
    s = lax.reduce_window(x, 0.0, lax.add, (1, 1, 3, 3), (1, 1, 1, 1),
                          [(0, 0), (0, 0), (1, 1), (1, 1)])
    return s / 9.0


def _l1_ssim_ref(pred, target, w1=1.0, w2=1.0):
    pred = pred.astype(jnp.float32)
    target = target.astype(jnp.float32)
    mp = _avg_pool3x3_ref(pred)
    mt = _avg_pool3x3_ref(target)
    sp = _avg_pool3x3_ref(pred - mp)
    st = _avg_pool3x3_ref(target - mt)
    ssim_map = ((2 * mp * mt + C1) * (2 * sp * st + C2)
                / ((mp ** 2 + mt ** 2 + C1) * (sp ** 2 + st ** 2 + C2)))
    return w1 * (-jnp.mean(ssim_map)) + w2 * jnp.mean(jnp.abs(pred - target))


if __name__ == "__main__":
    key = jax.random.PRNGKey(0)
    k1, k2 = jax.random.split(key)
    N, Cc, H, W = 2, 4, 16, 16
    pred = jax.random.uniform(k1, (N, Cc, H, W), dtype=jnp.float32)
    target = jax.random.uniform(k2, (N, Cc, H, W), dtype=jnp.float32)

    loss = l1_ssim_loss(pred, target, w1=1.0, w2=1.0)
    loss = jax.block_until_ready(loss)

    ref = jax.block_until_ready(_l1_ssim_ref(pred, target))
    assert jnp.allclose(loss, ref, rtol=1e-5, atol=1e-5), (loss, ref)

    print("KERNEL_OK")
</pallas_src>

<mosaic_0001>
module attributes {stable_mosaic.version = 11 : i64} {
  func.func @_l1ssim_kernel(%arg0: i32, %arg1: memref<1x16x128xf32, #tpu.memory_space<vmem>>, %arg2: memref<1x16x128xf32, #tpu.memory_space<vmem>>, %arg3: memref<1x1x128xf32, #tpu.memory_space<vmem>>) attributes {dimension_semantics = [#tpu.dimension_semantics<parallel>], iteration_bounds = array<i64: 1>, scalar_prefetch = 0 : i64, scratch_operands = 0 : i64, tpu.core_type = #tpu.core_type<tc>, window_params = [{transform_indices = @transform_0, window_bounds = array<i64: 1, 16, 128>}, {transform_indices = @transform_1, window_bounds = array<i64: 1, 16, 128>}, {transform_indices = @transform_2, window_bounds = array<i64: 1, 1, 128>}]} {
    %c0 = arith.constant 0 : index
    %c0_0 = arith.constant 0 : index
    %c0_1 = arith.constant 0 : index
    %0 = vector.load %arg1[%c0, %c0_0, %c0_1] : memref<1x16x128xf32, #tpu.memory_space<vmem>>, vector<1x16x128xf32>
    %c0_2 = arith.constant 0 : index
    %c0_3 = arith.constant 0 : index
    %c0_4 = arith.constant 0 : index
    %1 = vector.load %arg2[%c0_2, %c0_3, %c0_4] : memref<1x16x128xf32, #tpu.memory_space<vmem>>, vector<1x16x128xf32>
    %2 = tpu.iota {dimensions = array<i32: 2>} : vector<1x16x128xi32>
    %c16_i32 = arith.constant 16 : i32
    %c0_i32 = arith.constant 0 : i32
    %3 = arith.cmpi eq, %c16_i32, %c0_i32 : i32
    %c1_i32 = arith.constant 1 : i32
    %4 = arith.select %3, %c1_i32, %c16_i32 : i32
    %5 = vector.broadcast %4 : i32 to vector<1x16x128xi32>
    %6 = arith.remsi %2, %5 : vector<1x16x128xi32>
    %c0_i32_5 = arith.constant 0 : i32
    %7 = vector.broadcast %c0_i32_5 : i32 to vector<1x16x128xi32>
    %8 = arith.cmpi ne, %6, %7 : vector<1x16x128xi32>
    %c0_i32_6 = arith.constant 0 : i32
    %9 = vector.broadcast %c0_i32_6 : i32 to vector<1x16x128xi32>
    %10 = arith.cmpi slt, %6, %9 : vector<1x16x128xi32>
    %c0_i32_7 = arith.constant 0 : i32
    %11 = arith.cmpi slt, %4, %c0_i32_7 : i32
    %12 = vector.broadcast %11 : i1 to vector<1x16x128xi1>
    %13 = vector.broadcast %12 : vector<1x16x128xi1> to vector<1x16x128xi1>
    %14 = arith.xori %10, %13 : vector<1x16x128xi1>
    %15 = arith.andi %14, %8 : vector<1x16x128xi1>
    %16 = vector.broadcast %4 : i32 to vector<1x16x128xi32>
    %17 = arith.addi %6, %16 : vector<1x16x128xi32>
    %18 = arith.select %15, %17, %6 : vector<1x16x128xi1>, vector<1x16x128xi32>
    %19 = tpu.iota {dimensions = array<i32: 1>} : vector<1x16x128xi32>
    %c1_i32_8 = arith.constant 1 : i32
    %20 = vector.broadcast %c1_i32_8 : i32 to vector<1x16x128xi32>
    %21 = arith.cmpi sge, %18, %20 : vector<1x16x128xi32>
    %22 = arith.extui %21 : vector<1x16x128xi1> to vector<1x16x128xi32>
    %23 = arith.sitofp %22 : vector<1x16x128xi32> to vector<1x16x128xf32>
    %c14_i32 = arith.constant 14 : i32
    %24 = vector.broadcast %c14_i32 : i32 to vector<1x16x128xi32>
    %25 = arith.cmpi sle, %18, %24 : vector<1x16x128xi32>
    %26 = arith.extui %25 : vector<1x16x128xi1> to vector<1x16x128xi32>
    %27 = arith.sitofp %26 : vector<1x16x128xi32> to vector<1x16x128xf32>
    %c1_i32_9 = arith.constant 1 : i32
    %28 = vector.broadcast %c1_i32_9 : i32 to vector<1x16x128xi32>
    %29 = arith.cmpi sge, %19, %28 : vector<1x16x128xi32>
    %30 = arith.extui %29 : vector<1x16x128xi1> to vector<1x16x128xi32>
    %31 = arith.sitofp %30 : vector<1x16x128xi32> to vector<1x16x128xf32>
    %c14_i32_10 = arith.constant 14 : i32
    %32 = vector.broadcast %c14_i32_10 : i32 to vector<1x16x128xi32>
    %33 = arith.cmpi sle, %19, %32 : vector<1x16x128xi32>
    %34 = arith.extui %33 : vector<1x16x128xi1> to vector<1x16x128xi32>
    %35 = arith.sitofp %34 : vector<1x16x128xi32> to vector<1x16x128xf32>
    %c1_i32_11 = arith.constant 1 : i32
    %36 = tpu.dynamic_rotate %0 by %c1_i32_11 dim 2 : vector<1x16x128xf32>, i32 -> vector<1x16x128xf32>
    %37 = arith.mulf %36, %23 : vector<1x16x128xf32>
    %38 = arith.addf %0, %37 : vector<1x16x128xf32>
    %c127_i32 = arith.constant 127 : i32
    %39 = tpu.dynamic_rotate %0 by %c127_i32 dim 2 : vector<1x16x128xf32>, i32 -> vector<1x16x128xf32>
    %40 = arith.mulf %39, %27 : vector<1x16x128xf32>
    %41 = arith.addf %38, %40 : vector<1x16x128xf32>
    %c1_i32_12 = arith.constant 1 : i32
    %42 = tpu.dynamic_rotate %41 by %c1_i32_12 dim 1 : vector<1x16x128xf32>, i32 -> vector<1x16x128xf32>
    %43 = arith.mulf %42, %31 : vector<1x16x128xf32>
    %44 = arith.addf %41, %43 : vector<1x16x128xf32>
    %c15_i32 = arith.constant 15 : i32
    %45 = tpu.dynamic_rotate %41 by %c15_i32 dim 1 : vector<1x16x128xf32>, i32 -> vector<1x16x128xf32>
    %46 = arith.mulf %45, %35 : vector<1x16x128xf32>
    %47 = arith.addf %44, %46 : vector<1x16x128xf32>
    %cst = arith.constant 0.111111112 : f32
    %48 = vector.broadcast %cst : f32 to vector<1x16x128xf32>
    %49 = arith.mulf %47, %48 : vector<1x16x128xf32>
    %c1_i32_13 = arith.constant 1 : i32
    %50 = tpu.dynamic_rotate %1 by %c1_i32_13 dim 2 : vector<1x16x128xf32>, i32 -> vector<1x16x128xf32>
    %51 = arith.mulf %50, %23 : vector<1x16x128xf32>
    %52 = arith.addf %1, %51 : vector<1x16x128xf32>
    %c127_i32_14 = arith.constant 127 : i32
    %53 = tpu.dynamic_rotate %1 by %c127_i32_14 dim 2 : vector<1x16x128xf32>, i32 -> vector<1x16x128xf32>
    %54 = arith.mulf %53, %27 : vector<1x16x128xf32>
    %55 = arith.addf %52, %54 : vector<1x16x128xf32>
    %c1_i32_15 = arith.constant 1 : i32
    %56 = tpu.dynamic_rotate %55 by %c1_i32_15 dim 1 : vector<1x16x128xf32>, i32 -> vector<1x16x128xf32>
    %57 = arith.mulf %56, %31 : vector<1x16x128xf32>
    %58 = arith.addf %55, %57 : vector<1x16x128xf32>
    %c15_i32_16 = arith.constant 15 : i32
    %59 = tpu.dynamic_rotate %55 by %c15_i32_16 dim 1 : vector<1x16x128xf32>, i32 -> vector<1x16x128xf32>
    %60 = arith.mulf %59, %35 : vector<1x16x128xf32>
    %61 = arith.addf %58, %60 : vector<1x16x128xf32>
    %cst_17 = arith.constant 0.111111112 : f32
    %62 = vector.broadcast %cst_17 : f32 to vector<1x16x128xf32>
    %63 = arith.mulf %61, %62 : vector<1x16x128xf32>
    %64 = arith.subf %0, %49 : vector<1x16x128xf32>
    %c1_i32_18 = arith.constant 1 : i32
    %65 = tpu.dynamic_rotate %64 by %c1_i32_18 dim 2 : vector<1x16x128xf32>, i32 -> vector<1x16x128xf32>
    %66 = arith.mulf %65, %23 : vector<1x16x128xf32>
    %67 = arith.addf %64, %66 : vector<1x16x128xf32>
    %c127_i32_19 = arith.constant 127 : i32
    %68 = tpu.dynamic_rotate %64 by %c127_i32_19 dim 2 : vector<1x16x128xf32>, i32 -> vector<1x16x128xf32>
    %69 = arith.mulf %68, %27 : vector<1x16x128xf32>
    %70 = arith.addf %67, %69 : vector<1x16x128xf32>
    %c1_i32_20 = arith.constant 1 : i32
    %71 = tpu.dynamic_rotate %70 by %c1_i32_20 dim 1 : vector<1x16x128xf32>, i32 -> vector<1x16x128xf32>
    %72 = arith.mulf %71, %31 : vector<1x16x128xf32>
    %73 = arith.addf %70, %72 : vector<1x16x128xf32>
    %c15_i32_21 = arith.constant 15 : i32
    %74 = tpu.dynamic_rotate %70 by %c15_i32_21 dim 1 : vector<1x16x128xf32>, i32 -> vector<1x16x128xf32>
    %75 = arith.mulf %74, %35 : vector<1x16x128xf32>
    %76 = arith.addf %73, %75 : vector<1x16x128xf32>
    %cst_22 = arith.constant 0.111111112 : f32
    %77 = vector.broadcast %cst_22 : f32 to vector<1x16x128xf32>
    %78 = arith.mulf %76, %77 : vector<1x16x128xf32>
    %79 = arith.subf %1, %63 : vector<1x16x128xf32>
    %c1_i32_23 = arith.constant 1 : i32
    %80 = tpu.dynamic_rotate %79 by %c1_i32_23 dim 2 : vector<1x16x128xf32>, i32 -> vector<1x16x128xf32>
    %81 = arith.mulf %80, %23 : vector<1x16x128xf32>
    %82 = arith.addf %79, %81 : vector<1x16x128xf32>
    %c127_i32_24 = arith.constant 127 : i32
    %83 = tpu.dynamic_rotate %79 by %c127_i32_24 dim 2 : vector<1x16x128xf32>, i32 -> vector<1x16x128xf32>
    %84 = arith.mulf %83, %27 : vector<1x16x128xf32>
    %85 = arith.addf %82, %84 : vector<1x16x128xf32>
    %c1_i32_25 = arith.constant 1 : i32
    %86 = tpu.dynamic_rotate %85 by %c1_i32_25 dim 1 : vector<1x16x128xf32>, i32 -> vector<1x16x128xf32>
    %87 = arith.mulf %86, %31 : vector<1x16x128xf32>
    %88 = arith.addf %85, %87 : vector<1x16x128xf32>
    %c15_i32_26 = arith.constant 15 : i32
    %89 = tpu.dynamic_rotate %85 by %c15_i32_26 dim 1 : vector<1x16x128xf32>, i32 -> vector<1x16x128xf32>
    %90 = arith.mulf %89, %35 : vector<1x16x128xf32>
    %91 = arith.addf %88, %90 : vector<1x16x128xf32>
    %cst_27 = arith.constant 0.111111112 : f32
    %92 = vector.broadcast %cst_27 : f32 to vector<1x16x128xf32>
    %93 = arith.mulf %91, %92 : vector<1x16x128xf32>
    %cst_28 = arith.constant 2.000000e+00 : f32
    %94 = vector.broadcast %cst_28 : f32 to vector<1x16x128xf32>
    %95 = arith.mulf %94, %49 : vector<1x16x128xf32>
    %96 = arith.mulf %95, %63 : vector<1x16x128xf32>
    %cst_29 = arith.constant 9.99999974E-5 : f32
    %97 = vector.broadcast %cst_29 : f32 to vector<1x16x128xf32>
    %98 = arith.addf %96, %97 : vector<1x16x128xf32>
    %cst_30 = arith.constant 2.000000e+00 : f32
    %99 = vector.broadcast %cst_30 : f32 to vector<1x16x128xf32>
    %100 = arith.mulf %99, %78 : vector<1x16x128xf32>
    %101 = arith.mulf %100, %93 : vector<1x16x128xf32>
    %cst_31 = arith.constant 8.99999984E-4 : f32
    %102 = vector.broadcast %cst_31 : f32 to vector<1x16x128xf32>
    %103 = arith.addf %101, %102 : vector<1x16x128xf32>
    %104 = arith.mulf %98, %103 : vector<1x16x128xf32>
    %105 = arith.mulf %49, %49 : vector<1x16x128xf32>
    %106 = arith.mulf %63, %63 : vector<1x16x128xf32>
    %107 = arith.addf %105, %106 : vector<1x16x128xf32>
    %cst_32 = arith.constant 9.99999974E-5 : f32
    %108 = vector.broadcast %cst_32 : f32 to vector<1x16x128xf32>
    %109 = arith.addf %107, %108 : vector<1x16x128xf32>
    %110 = arith.mulf %78, %78 : vector<1x16x128xf32>
    %111 = arith.mulf %93, %93 : vector<1x16x128xf32>
    %112 = arith.addf %110, %111 : vector<1x16x128xf32>
    %cst_33 = arith.constant 8.99999984E-4 : f32
    %113 = vector.broadcast %cst_33 : f32 to vector<1x16x128xf32>
    %114 = arith.addf %112, %113 : vector<1x16x128xf32>
    %115 = arith.mulf %109, %114 : vector<1x16x128xf32>
    %116 = tpu.reciprocal %115 {approx = true} : vector<1x16x128xf32> -> vector<1x16x128xf32>
    %117 = arith.mulf %115, %116 : vector<1x16x128xf32>
    %cst_34 = arith.constant 2.000000e+00 : f32
    %118 = vector.broadcast %cst_34 : f32 to vector<1x16x128xf32>
    %119 = arith.subf %118, %117 : vector<1x16x128xf32>
    %120 = arith.mulf %116, %119 : vector<1x16x128xf32>
    %121 = arith.mulf %104, %120 : vector<1x16x128xf32>
    %cst_35 = arith.constant dense<0.000000e+00> : vector<16x128xf32>
    %122 = vector.multi_reduction <add>, %121, %cst_35 [0] : vector<1x16x128xf32> to vector<16x128xf32>
    %123 = vector.shape_cast %122 : vector<16x128xf32> to vector<1x16x128xf32>
    %cst_36 = arith.constant dense<0.000000e+00> : vector<1xf32>
    %124 = vector.multi_reduction <add>, %123, %cst_36 [1, 2] : vector<1x16x128xf32> to vector<1xf32>
    %125 = vector.shape_cast %124 : vector<1xf32> to vector<1x1x1xf32>
    %126 = vector.extract %125[0, 0, 0] : f32 from vector<1x1x1xf32>
    %127 = arith.subf %0, %1 : vector<1x16x128xf32>
    %128 = math.absf %127 : vector<1x16x128xf32>
    %cst_37 = arith.constant dense<0.000000e+00> : vector<16x128xf32>
    %129 = vector.multi_reduction <add>, %128, %cst_37 [0] : vector<1x16x128xf32> to vector<16x128xf32>
    %130 = vector.shape_cast %129 : vector<16x128xf32> to vector<1x16x128xf32>
    %cst_38 = arith.constant dense<0.000000e+00> : vector<1xf32>
    %131 = vector.multi_reduction <add>, %130, %cst_38 [1, 2] : vector<1x16x128xf32> to vector<1xf32>
    %132 = vector.shape_cast %131 : vector<1xf32> to vector<1x1x1xf32>
    %133 = vector.extract %132[0, 0, 0] : f32 from vector<1x1x1xf32>
    %134 = tpu.iota {dimensions = array<i32: 1>} : vector<1x128xi32>
    %c0_i32_39 = arith.constant 0 : i32
    %135 = vector.broadcast %c0_i32_39 : i32 to vector<1x128xi32>
    %136 = arith.cmpi eq, %134, %135 : vector<1x128xi32>
    %c1_i32_40 = arith.constant 1 : i32
    %137 = vector.broadcast %c1_i32_40 : i32 to vector<1x128xi32>
    %138 = arith.cmpi eq, %134, %137 : vector<1x128xi32>
    %cst_41 = arith.constant 0.000000e+00 : f32
    %139 = vector.broadcast %133 : f32 to vector<1x128xf32>
    %140 = vector.broadcast %cst_41 : f32 to vector<1x128xf32>
    %141 = arith.select %138, %139, %140 : vector<1x128xi1>, vector<1x128xf32>
    %142 = vector.broadcast %126 : f32 to vector<1x128xf32>
    %143 = arith.select %136, %142, %141 : vector<1x128xi1>, vector<1x128xf32>
    %c0_42 = arith.constant 0 : index
    %c0_43 = arith.constant 0 : index
    %c0_44 = arith.constant 0 : index
    %144 = vector.load %arg3[%c0_42, %c0_43, %c0_44] : memref<1x1x128xf32, #tpu.memory_space<vmem>>, vector<1x1x128xf32>
    %145 = vector.shape_cast %144 : vector<1x1x128xf32> to vector<1x128xf32>
    %146 = vector.shape_cast %143 : vector<1x128xf32> to vector<1x1x128xf32>
    tpu.vector_store %arg3[%c0_42, %c0_43, %c0_44], %146 {strides = array<i32>} : memref<1x1x128xf32, #tpu.memory_space<vmem>>, vector<1x1x128xf32>,
    return
  }
  func.func @transform_0(%arg0: i32) -> (i32, i32, i32) {
    %c0_i32 = arith.constant 0 : i32
    %c0_i32_0 = arith.constant 0 : i32
    %c0_i32_1 = arith.constant 0 : i32
    return %arg0, %c0_i32, %c0_i32_0 : i32, i32, i32
  }
  func.func @transform_1(%arg0: i32) -> (i32, i32, i32) {
    %c0_i32 = arith.constant 0 : i32
    %c0_i32_0 = arith.constant 0 : i32
    %c0_i32_1 = arith.constant 0 : i32
    return %arg0, %c0_i32, %c0_i32_0 : i32, i32, i32
  }
  func.func @transform_2(%arg0: i32) -> (i32, i32, i32) {
    %c0_i32 = arith.constant 0 : i32
    %c0_i32_0 = arith.constant 0 : i32
    %c0_i32_1 = arith.constant 0 : i32
    return %arg0, %c0_i32, %c0_i32_0 : i32, i32, i32
  }
}

</mosaic_0001>

<llo_original>
// kernel: tpu_custom_call.1
$region0: #{tpu_custom_call.1}
  #allocation0 [shape = 'u32[]', space=smem, size = 0x4, offset = 0x4, fixed_abs, tag = 'smem constant byte address 0x4 - core index']
  #allocation1 [shape = 'u32[144,128]{1,0:T(1,128)}', space=vmem, size = 0x12000, scoped, tag = 'internal scratch']
  %s0 = inlined_call_operand.hbm [shape: f32[1,16,128], index: 0, kind: input, shape index: {}]
  %s1 = inlined_call_operand.hbm [shape: f32[1,16,128], index: 1, kind: input, shape index: {}]
  %s2 = inlined_call_operand.hbm [shape: f32[1,1,128], index: 2, kind: output, shape index: {}]
  %s3 = sld [smem:[#allocation0]]
  $region26: #{tpu_custom_call.1} parent=0
    _
  %s5 = ssub.s32 1, %s3
  %s6 = scalar_select 0, %s5, %s3
  $region1: #{tpu_custom_call.1} parent=0
    #allocation2 [shape = 'u8[8192]{0}', space=vmem, size = 0x2000, scoped, tag = 'input window, operand 0, single buffered']
    #allocation3 [shape = 's32[1]{0}', space=sflag, size = 0x4, scoped, tag = 'scoped memory for tpu_custom_call.1']
    #allocation4 [shape = 's32[1]{0}', space=sflag, size = 0x4, scoped, tag = 'scoped memory for tpu_custom_call.1']
    #allocation5 [shape = 'u8[8192]{0}', space=vmem, size = 0x2000, scoped, tag = 'input window, operand 1, single buffered']
    #allocation6 [shape = 's32[1]{0}', space=sflag, size = 0x4, scoped, tag = 'scoped memory for tpu_custom_call.1']
    #allocation7 [shape = 'u8[512]{0}', space=vmem, size = 0x400, scoped, tag = 'output window, operand 0, single buffered']
    %7 = vsyncpa [#allocation3], 0
    %8 = vsyncpa [#allocation6], 0
    %9 = vsyncpa [#allocation4], 0
    // Predicated region
    $region2: #{tpu_custom_call.1} parent=1 // pred_check
      _
    $region3: #{tpu_custom_call.1} parent=1 // pred_check_branch
      %11 = sbr.rel (0) target = $region5
    $region4: #{tpu_custom_call.1} parent=1 // pred_region
      %s13 = ssub.s32 256, 256
      %14 = vsyncadd [#allocation3], %s13
      %s15 = sshll.u32 [#allocation2], 4
      %s16 = int_to_ptr.vmem [resolvable:$true] %s15
      %21 = dma.hbm_to_vmem [thread:$0]  %s0, 256, %s16, [#allocation3], 128, 128, 8
    $region5: #{tpu_custom_call.1} parent=1 // pred_fallthru
      _
    // Predicated region
    $region6: #{tpu_custom_call.1} parent=1 // pred_check
      _
    $region7: #{tpu_custom_call.1} parent=1 // pred_check_branch
      %23 = sbr.rel (0) target = $region9
    $region8: #{tpu_custom_call.1} parent=1 // pred_region
      %s25 = ssub.s32 256, 256
      %26 = vsyncadd [#allocation6], %s25
      %s27 = sshll.u32 [#allocation5], 4
      %s28 = int_to_ptr.vmem [resolvable:$true] %s27
      %33 = dma.hbm_to_vmem [thread:$0]  %s1, 256, %s28, [#allocation6], 128, 128, 8
    $region9: #{tpu_custom_call.1} parent=1 // pred_fallthru
      _
    // Predicated region
    $region10: #{tpu_custom_call.1} parent=1 // pred_check
      _
    $region11: #{tpu_custom_call.1} parent=1 // pred_check_branch
      %35 = sbr.rel (0) target = $region13
    $region12: #{tpu_custom_call.1} parent=1 // pred_region
      %36 = dma.done [#allocation3], 256
    $region13: #{tpu_custom_call.1} parent=1 // pred_fallthru
      _
    // Predicated region
    $region14: #{tpu_custom_call.1} parent=1 // pred_check
      _
    $region15: #{tpu_custom_call.1} parent=1 // pred_check_branch
      %38 = sbr.rel (0) target = $region17
    $region16: #{tpu_custom_call.1} parent=1 // pred_region
      %39 = dma.done [#allocation6], 256
    $region17: #{tpu_custom_call.1} parent=1 // pred_fallthru
      _
    %v40 = vld [vmem:[#allocation2] sm:$0xff]
    %v41 = vld [vmem:[#allocation2 + $0x8] sm:$0xff]
    %v42 = vld [vmem:[#allocation5] sm:$0xff]
    %v43 = vld [vmem:[#allocation5 + $0x8] sm:$0xff]
    %v44 = vlaneseq
    %v45 = vand.u32 %v44, 127
    %vm46 = vcmp.lt.s32.totalorder %v45, 0
    %v47 = vsub.s32 0, %v45
    %v48 = vsel %vm46, %v47, %v45
    %v49 = vshrl.u32 %v48, 4
    %v50 = vand.u32 %v48, 15
    %v51 = vsub.s32 0, %v50
    %v52 = vsel %vm46, %v51, %v50
    %vm53 = vcmp.ne.s32.totalorder %v52, 0
    %vm54 = vcmp.lt.s32.totalorder %v52, 0
    %vm55 = vmand %vm54, %vm53
    %v56 = vadd.s32 %v52, 16
    %v57 = vsel %vm55, %v56, %v52
    %v58 = vlaneseq
    %v59 = vshrl.u32 %v58, 7
    %v60 = vadd.s32 %v59, 8
    %vm61 = vcmp.ge.s32.totalorder %v57, 1
    %v62 = vsel %vm61, 1, 0
    %v63 = vcvt.s32.f32 %v62
    %vm64 = vcmp.le.s32.totalorder %v57, 14
    %v65 = vsel %vm64, 1, 0
    %v66 = vcvt.s32.f32 %v65
    %vm67 = vcmp.ge.s32.totalorder %v59, 1
    %vm68 = vcmp.ge.s32.totalorder %v60, 1
    %v69 = vsel %vm67, 1, 0
    %v70 = vsel %vm68, 1, 0
    %v71 = vcvt.s32.f32 %v69
    %v72 = vcvt.s32.f32 %v70
    %vm73 = vcmp.le.s32.totalorder %v59, 14
    %vm74 = vcmp.le.s32.totalorder %v60, 14
    %v75 = vsel %vm73, 1, 0
    %v76 = vsel %vm74, 1, 0
    %v77 = vcvt.s32.f32 %v75
    %v78 = vcvt.s32.f32 %v76
    %79 = vrot.lane.b32.xlu0 %v40, 1
    %v80 = vpop.permute.xlu0 %79
    %81 = vrot.lane.b32.xlu0 %v41, 1
    %v82 = vpop.permute.xlu0 %81
    %v83 = vmul.f32 %v80, %v63
    %v84 = vmul.f32 %v82, %v63
    %v85 = vadd.f32 %v40, %v83
    %v86 = vadd.f32 %v41, %v84
    %87 = vrot.lane.b32.xlu0 %v40, 127
    %v88 = vpop.permute.xlu0 %87
    %89 = vrot.lane.b32.xlu0 %v41, 127
    %v90 = vpop.permute.xlu0 %89
    %v91 = vmul.f32 %v88, %v66
    %v92 = vmul.f32 %v90, %v66
    %v93 = vadd.f32 %v85, %v91
    %v94 = vadd.f32 %v86, %v92
    %v95 = vrot.slane %v93, 7
    %v96 = vrot.slane %v94, 7
    %vm97 = vcmp.lt.s32.totalorder %v59, 1
    %v98 = vsel %vm97, %v95, %v96
    %v99 = vsel %vm97, %v96, %v95
    %v100 = vmul.f32 %v99, %v71
    %v101 = vmul.f32 %v98, %v72
    %v102 = vadd.f32 %v93, %v100
    %v103 = vadd.f32 %v94, %v101
    %v104 = vrot.slane %v93, 1
    %v105 = vrot.slane %v94, 1
    %vm106 = vcmp.lt.s32.totalorder %v59, 7
    %v107 = vsel %vm106, %v104, %v105
    %v108 = vsel %vm106, %v105, %v104
    %v109 = vmul.f32 %v107, %v77
    %v110 = vmul.f32 %v108, %v78
    %v111 = vadd.f32 %v102, %v109
    %v112 = vadd.f32 %v103, %v110
    %v113 = vmul.f32 %v111, 0.11111111
    %v114 = vmul.f32 %v112, 0.11111111
    %115 = vrot.lane.b32.xlu0 %v42, 1
    %v116 = vpop.permute.xlu0 %115
    %117 = vrot.lane.b32.xlu0 %v43, 1
    %v118 = vpop.permute.xlu0 %117
    %v119 = vmul.f32 %v116, %v63
    %v120 = vmul.f32 %v118, %v63
    %v121 = vadd.f32 %v42, %v119
    %v122 = vadd.f32 %v43, %v120
    %123 = vrot.lane.b32.xlu0 %v42, 127
    %v124 = vpop.permute.xlu0 %123
    %125 = vrot.lane.b32.xlu0 %v43, 127
    %v126 = vpop.permute.xlu0 %125
    %v127 = vmul.f32 %v124, %v66
    %v128 = vmul.f32 %v126, %v66
    %v129 = vadd.f32 %v121, %v127
    %v130 = vadd.f32 %v122, %v128
    %v131 = vrot.slane %v129, 7
    %v132 = vrot.slane %v130, 7
    %v133 = vsel %vm97, %v131, %v132
    %v134 = vsel %vm97, %v132, %v131
    %v135 = vmul.f32 %v134, %v71
    %v136 = vmul.f32 %v133, %v72
    %v137 = vadd.f32 %v129, %v135
    %v138 = vadd.f32 %v130, %v136
    %v139 = vrot.slane %v129, 1
    %v140 = vrot.slane %v130, 1
    %v141 = vsel %vm106, %v139, %v140
    %v142 = vsel %vm106, %v140, %v139
    %v143 = vmul.f32 %v141, %v77
    %v144 = vmul.f32 %v142, %v78
    %v145 = vadd.f32 %v137, %v143
    %v146 = vadd.f32 %v138, %v144
    %v147 = vmul.f32 %v145, 0.11111111
    %v148 = vmul.f32 %v146, 0.11111111
    %v149 = vsub.f32 %v40, %v113
    %v150 = vsub.f32 %v41, %v114
    %151 = vrot.lane.b32.xlu0 %v149, 1
    %v152 = vpop.permute.xlu0 %151
    %153 = vrot.lane.b32.xlu0 %v150, 1
    %v154 = vpop.permute.xlu0 %153
    %v155 = vmul.f32 %v152, %v63
    %v156 = vmul.f32 %v154, %v63
    %v157 = vadd.f32 %v149, %v155
    %v158 = vadd.f32 %v150, %v156
    %159 = vrot.lane.b32.xlu0 %v149, 127
    %v160 = vpop.permute.xlu0 %159
    %161 = vrot.lane.b32.xlu0 %v150, 127
    %v162 = vpop.permute.xlu0 %161
    %v163 = vmul.f32 %v160, %v66
    %v164 = vmul.f32 %v162, %v66
    %v165 = vadd.f32 %v157, %v163
    %v166 = vadd.f32 %v158, %v164
    %v167 = vrot.slane %v165, 7
    %v168 = vrot.slane %v166, 7
    %v169 = vsel %vm97, %v167, %v168
    %v170 = vsel %vm97, %v168, %v167
    %v171 = vmul.f32 %v170, %v71
    %v172 = vmul.f32 %v169, %v72
    %v173 = vadd.f32 %v165, %v171
    %v174 = vadd.f32 %v166, %v172
    %v175 = vrot.slane %v165, 1
    %v176 = vrot.slane %v166, 1
    %v177 = vsel %vm106, %v175, %v176
    %v178 = vsel %vm106, %v176, %v175
    %v179 = vmul.f32 %v177, %v77
    %v180 = vmul.f32 %v178, %v78
    %v181 = vadd.f32 %v173, %v179
    %v182 = vadd.f32 %v174, %v180
    %v183 = vmul.f32 %v181, 0.11111111
    %v184 = vmul.f32 %v182, 0.11111111
    %v185 = vsub.f32 %v42, %v147
    %v186 = vsub.f32 %v43, %v148
    %187 = vrot.lane.b32.xlu0 %v185, 1
    %v188 = vpop.permute.xlu0 %187
    %189 = vrot.lane.b32.xlu0 %v186, 1
    %v190 = vpop.permute.xlu0 %189
    %v191 = vmul.f32 %v188, %v63
    %v192 = vmul.f32 %v190, %v63
    %v193 = vadd.f32 %v185, %v191
    %v194 = vadd.f32 %v186, %v192
    %195 = vrot.lane.b32.xlu0 %v185, 127
    %v196 = vpop.permute.xlu0 %195
    %197 = vrot.lane.b32.xlu0 %v186, 127
    %v198 = vpop.permute.xlu0 %197
    %v199 = vmul.f32 %v196, %v66
    %v200 = vmul.f32 %v198, %v66
    %v201 = vadd.f32 %v193, %v199
    %v202 = vadd.f32 %v194, %v200
    %v203 = vrot.slane %v201, 7
    %v204 = vrot.slane %v202, 7
    %v205 = vsel %vm97, %v203, %v204
    %v206 = vsel %vm97, %v204, %v203
    %v207 = vmul.f32 %v206, %v71
    %v208 = vmul.f32 %v205, %v72
    %v209 = vadd.f32 %v201, %v207
    %v210 = vadd.f32 %v202, %v208
    %v211 = vrot.slane %v201, 1
    %v212 = vrot.slane %v202, 1
    %v213 = vsel %vm106, %v211, %v212
    %v214 = vsel %vm106, %v212, %v211
    %v215 = vmul.f32 %v213, %v77
    %v216 = vmul.f32 %v214, %v78
    %v217 = vadd.f32 %v209, %v215
    %v218 = vadd.f32 %v210, %v216
    %v219 = vmul.f32 %v217, 0.11111111
    %v220 = vmul.f32 %v218, 0.11111111
    %v221 = vmul.f32 %v113, 2.0
    %v222 = vmul.f32 %v114, 2.0
    %v223 = vmul.f32 %v221, %v147
    %v224 = vmul.f32 %v222, %v148
    %v225 = vadd.f32 %v223, 0.0001
    %v226 = vadd.f32 %v224, 0.0001
    %v227 = vmul.f32 %v183, 2.0
    %v228 = vmul.f32 %v184, 2.0
    %v229 = vmul.f32 %v227, %v219
    %v230 = vmul.f32 %v228, %v220
    %v231 = vadd.f32 %v229, 0.0009
    %v232 = vadd.f32 %v230, 0.0009
    %v233 = vmul.f32 %v225, %v231
    %v234 = vmul.f32 %v226, %v232
    %v235 = vmul.f32 %v113, %v113
    %v236 = vmul.f32 %v114, %v114
    %v237 = vmul.f32 %v147, %v147
    %v238 = vmul.f32 %v148, %v148
    %v239 = vadd.f32 %v235, %v237
    %v240 = vadd.f32 %v236, %v238
    %v241 = vadd.f32 %v239, 0.0001
    %v242 = vadd.f32 %v240, 0.0001
    %v243 = vmul.f32 %v183, %v183
    %v244 = vmul.f32 %v184, %v184
    %v245 = vmul.f32 %v219, %v219
    %v246 = vmul.f32 %v220, %v220
    %v247 = vadd.f32 %v243, %v245
    %v248 = vadd.f32 %v244, %v246
    %v249 = vadd.f32 %v247, 0.0009
    %v250 = vadd.f32 %v248, 0.0009
    %v251 = vmul.f32 %v241, %v249
    %v252 = vmul.f32 %v242, %v250
    %v253 = vrcp.pop %v251
    %v254 = vrcp.pop %v252
    %v255 = vmul.f32 %v251, %v253
    %v256 = vmul.f32 %v252, %v254
    %v257 = vsub.f32 2.0, %v255
    %v258 = vsub.f32 2.0, %v256
    %v259 = vmul.f32 %v253, %v257
    %v260 = vmul.f32 %v254, %v258
    %v261 = vmul.f32 %v233, %v259
    %v262 = vmul.f32 %v234, %v260
    %v263 = vadd.f32 %v261, 0.0
    %v264 = vadd.f32 %v262, 0.0
    %v265 = vadd.f32 %v263, %v264
    %266 = vadd.xlane.f32.xlu0 %v265
    %v267 = vpop.xlane.xlu0 %266
    %v268 = vrot.slane %v267, 4
    %v269 = vadd.f32 %v267, %v268
    %v270 = vrot.slane %v269, 2
    %v271 = vadd.f32 %v269, %v270
    %v272 = vrot.slane %v271, 1
    %v273 = vadd.f32 %v271, %v272
    %s274 = vtos %v273
    %v275 = vsub.f32 %v40, %v42
    %v276 = vsub.f32 %v41, %v43
    %v277 = vand.u32 2147483647, %v275
    %v278 = vand.u32 2147483647, %v276
    %v279 = vadd.f32 %v277, 0.0
    %v280 = vadd.f32 %v278, 0.0
    %v281 = vadd.f32 %v279, %v280
    %282 = vadd.xlane.f32.xlu0 %v281
    %v283 = vpop.xlane.xlu0 %282
    %v284 = vrot.slane %v283, 4
    %v285 = vadd.f32 %v283, %v284
    %v286 = vrot.slane %v285, 2
    %v287 = vadd.f32 %v285, %v286
    %v288 = vrot.slane %v287, 1
    %v289 = vadd.f32 %v287, %v288
    %s290 = vtos %v289
    %vm291 = vcmp.eq.s32.totalorder %v45, 0
    %vm292 = vcmp.eq.s32.totalorder %v45, 1
    %v293 = vstv %s290
    %v294 = vsel %vm292, %v293, 0.0
    %v295 = vstv %s274
    %v296 = vsel %vm291, %v295, %v294
    %297 = vst [vmem:[#allocation7] sm:$0x1] %v296
    // Predicated region
    $region18: #{tpu_custom_call.1} parent=1 // pred_check
      _
    $region19: #{tpu_custom_call.1} parent=1 // pred_check_branch
      %299 = sbr.rel (0) target = $region21
    $region20: #{tpu_custom_call.1} parent=1 // pred_region
      %s301 = ssub.s32 16, 16
      %302 = vsyncadd [#allocation4], %s301
      %s304 = sshll.u32 [#allocation7], 4
      %s305 = int_to_ptr.vmem [resolvable:$true] %s304
      %307 = dma.vmem_to_hbm [thread:$0]  %s305, 16, %s2, [#allocation4]
    $region21: #{tpu_custom_call.1} parent=1 // pred_fallthru
      _
    // Predicated region
    $region22: #{tpu_custom_call.1} parent=1 // pred_check
      _
    $region23: #{tpu_custom_call.1} parent=1 // pred_check_branch
      %309 = sbr.rel (0) target = $region25
    $region24: #{tpu_custom_call.1} parent=1 // pred_region
      %310 = dma.done [#allocation4], 16
    $region25: #{tpu_custom_call.1} parent=1 // pred_fallthru
      _
    %311 = vsyncpa [#allocation3], 1
    %312 = vsyncpa [#allocation6], 1
    %313 = vsyncpa [#allocation4], 1

</llo_original>
